<compile_context>
chip_gen: v7x
topology: tpu7x:2x2x1
jax: 0.10.0
libtpu: 0.0.40
codegen_flags: <defaults>
</compile_context>

<pallas_src>
import functools

import jax
import jax.numpy as jnp
from jax.experimental import pallas as pl
from jax.experimental.pallas import tpu as pltpu


# ---------------------------------------------------------------------------
# Kernel factory
# ---------------------------------------------------------------------------
def _make_bridge_kernel(n_streams, use_scratch):
    """Kernel over grid = (n_tile [parallel], enc_layer k [reduction]).

    Ref order: x_0..x_{S-1}, w_0..w_{S-1}, b_0..b_{S-1}, o_0..o_{S-1}[, acc_0..]
      x_s : (1, B, E)    encoder-layer slab (h or c stream)
      w_s : (1, E, TN)   weight slab for (enc layer k, N tile n)
      b_s : (1, TN)      bias slab (f32)
      o_s : (B, TN)      flat decoder output slab (lane-dense)
      acc : (B, TN) f32  scratch accumulator (only when output is not f32)
    """

    def kernel(*refs):
        xs = refs[0:n_streams]
        ws = refs[n_streams:2 * n_streams]
        bs = refs[2 * n_streams:3 * n_streams]
        outs = refs[3 * n_streams:4 * n_streams]
        accs = refs[4 * n_streams:] if use_scratch else outs

        k = pl.program_id(1)

        @pl.when(k == 0)
        def _init():
            for a in accs:
                a[...] = jnp.zeros_like(a)

        for x, w, a in zip(xs, ws, accs):
            a[...] += jnp.dot(x[0].astype(w.dtype), w[0],
                              preferred_element_type=jnp.float32)

        @pl.when(k == pl.num_programs(1) - 1)
        def _finalize():
            if use_scratch:
                for o, a, b in zip(outs, accs, bs):
                    o[...] = (a[...] + b[...]).astype(o.dtype)
            else:
                for o, b in zip(outs, bs):
                    o[...] += b[...].astype(o.dtype)

    return kernel


# ---------------------------------------------------------------------------
# Tiling / VMEM budgeting
# ---------------------------------------------------------------------------
def _round_up(x, m):
    return (x + m - 1) // m * m


def _choose_tn(n_pad, e, n_streams, w_bytes):
    """Pick the N tile: multiple of 128, divides n_pad, weight double-buffers
    (all streams) kept under ~32 MiB so the whole pipeline fits v7x's 64 MiB."""
    weight_budget = 32 << 20
    per_lane = max(1, n_streams * 2 * e * w_bytes)   # bytes per output lane
    tn = (weight_budget // per_lane) // 128 * 128
    tn = max(128, min(tn, n_pad))
    while n_pad % tn:
        tn -= 128
    # Prefer >= 2 N-tiles so the "parallel" axis can shard across v7x's 2 TCs.
    if n_pad // tn < 2 and n_pad >= 256:
        half = (n_pad // 2) // 128 * 128
        while half >= 128 and n_pad % half:
            half -= 128
        if half >= 128:
            tn = half
    return tn


def _vmem_limit_bytes(n_streams, b, e, tn, w_bytes, act_bytes, out_bytes,
                      use_scratch):
    per_stream = (2 * e * tn * w_bytes        # weight double buffer
                  + 2 * b * e * act_bytes     # activation double buffer
                  + 2 * b * tn * out_bytes    # output double buffer
                  + 2 * tn * 4                # bias double buffer (f32)
                  + (b * tn * 4 if use_scratch else 0))
    total = int(n_streams * per_stream * 1.25) + (2 << 20)
    return int(max(32 << 20, min(total, 64 << 20)))


# ---------------------------------------------------------------------------
# Wrapper: one fused pallas_call for 1 (GRU) or 2 (LSTM) streams
# ---------------------------------------------------------------------------
def _dense_bridge(states, weights, biases):
    """states: S x (L,B,E); weights: S x (L,E,Npad); biases: S x (1,Npad) f32.
    Returns S flat outputs of shape (B, Npad), dtype = states dtype."""
    n_streams = len(states)
    L, B, E = states[0].shape
    Npad = weights[0].shape[-1]
    out_dtype = states[0].dtype

    w_bytes = jnp.dtype(weights[0].dtype).itemsize
    act_bytes = jnp.dtype(states[0].dtype).itemsize
    out_bytes = jnp.dtype(out_dtype).itemsize
    use_scratch = jnp.dtype(out_dtype) != jnp.dtype(jnp.float32)

    tn = _choose_tn(Npad, E, n_streams, w_bytes)
    n_tiles = Npad // tn

    state_spec = pl.BlockSpec((1, B, E), lambda n, k: (k, 0, 0))
    w_spec = pl.BlockSpec((1, E, tn), lambda n, k: (k, 0, n))
    b_spec = pl.BlockSpec((1, tn), lambda n, k: (0, n))
    out_spec = pl.BlockSpec((B, tn), lambda n, k: (0, n))

    in_specs = ([state_spec] * n_streams
                + [w_spec] * n_streams
                + [b_spec] * n_streams)
    out_shape = tuple(jax.ShapeDtypeStruct((B, Npad), out_dtype)
                      for _ in range(n_streams))
    out_specs = tuple(out_spec for _ in range(n_streams))
    scratch = ([pltpu.VMEM((B, tn), jnp.float32)] * n_streams
               if use_scratch else [])

    # States are re-streamed once per N tile; weights/biases/outputs touched once.
    bytes_accessed = n_streams * (
        n_tiles * L * B * E * act_bytes
        + L * E * Npad * w_bytes
        + B * Npad * out_bytes
        + Npad * 4)
    cost = pl.CostEstimate(
        flops=2 * n_streams * B * L * E * Npad,
        transcendentals=0,
        bytes_accessed=int(bytes_accessed))

    fn = pl.pallas_call(
        _make_bridge_kernel(n_streams, use_scratch),
        out_shape=out_shape,
        grid=(n_tiles, L),
        in_specs=in_specs,
        out_specs=out_specs,
        scratch_shapes=scratch,
        compiler_params=pltpu.CompilerParams(
            dimension_semantics=("parallel", "arbitrary"),
            vmem_limit_bytes=_vmem_limit_bytes(
                n_streams, B, E, tn, w_bytes, act_bytes, out_bytes,
                use_scratch)),
        cost_estimate=cost,
    )
    return fn(*states, *weights, *biases)


# ---------------------------------------------------------------------------
# DenseBridge module (parameters + forward), matching the PyTorch module.
# ---------------------------------------------------------------------------
class DenseBridge:
    def __init__(self, enc_layers, enc_rnn_size, bidirectional, dec_rnn_type,
                 dec_layers, dec_rnn_size, key, param_dtype=jnp.bfloat16):
        # param_dtype applies to the weight matrices only (biases and
        # accumulation stay f32). bf16 halves HBM weight traffic.
        self.dec_rnn_type = dec_rnn_type
        self.dec_layers = dec_layers
        self.dec_rnn_size = dec_rnn_size

        L, E, D, R = enc_layers, enc_rnn_size, dec_layers, dec_rnn_size
        in_dim, out_dim = L * E, D * R
        n_pad = _round_up(out_dim, 128)   # lane-dense output / weight N dim
        self._n_pad = n_pad

        bound = 1.0 / (in_dim ** 0.5)     # PyTorch nn.Linear default init range
        ks = jax.random.split(key, 4)

        def _to_kernel_layout(w_pt):
            # (D*R, L*E) -> (L, E, D*R) -> zero-pad N to n_pad. Done ONCE.
            w = jnp.transpose(w_pt.reshape(D * R, L, E), (1, 2, 0))
            if n_pad > out_dim:
                w = jnp.pad(w, ((0, 0), (0, 0), (0, n_pad - out_dim)))
            return w.astype(param_dtype)

        def _to_kernel_bias(b_pt):
            b = b_pt.astype(jnp.float32)
            if n_pad > out_dim:
                b = jnp.pad(b, (0, n_pad - out_dim))
            return b.reshape(1, n_pad)

        # PyTorch-layout masters kept only so the reference check in __main__
        # can reproduce nn.Linear exactly.
        self.w_h_pt = jax.random.uniform(ks[0], (out_dim, in_dim),
                                         minval=-bound, maxval=bound,
                                         dtype=jnp.float32)
        self.b_h_pt = jax.random.uniform(ks[1], (out_dim,),
                                         minval=-bound, maxval=bound,
                                         dtype=jnp.float32)
        self.w_h = _to_kernel_layout(self.w_h_pt)
        self.b_h = _to_kernel_bias(self.b_h_pt)

        if dec_rnn_type == 'LSTM':
            self.w_c_pt = jax.random.uniform(ks[2], (out_dim, in_dim),
                                             minval=-bound, maxval=bound,
                                             dtype=jnp.float32)
            self.b_c_pt = jax.random.uniform(ks[3], (out_dim,),
                                             minval=-bound, maxval=bound,
                                             dtype=jnp.float32)
            self.w_c = _to_kernel_layout(self.w_c_pt)
            self.b_c = _to_kernel_bias(self.b_c_pt)

    def _unflatten(self, y_flat):
        # (B, Npad) -> strip padding -> (B, D, R) -> (D, B, R)  (cheap, in XLA)
        B = y_flat.shape[0]
        y = y_flat[:, : self.dec_layers * self.dec_rnn_size]
        y = y.reshape(B, self.dec_layers, self.dec_rnn_size)
        return jnp.transpose(y, (1, 0, 2))

    def __call__(self, encoder_final):
        h_enc = encoder_final[0]
        if self.dec_rnn_type == 'GRU':
            (h_flat,) = _dense_bridge((h_enc,), (self.w_h,), (self.b_h,))
            return (self._unflatten(h_flat),)
        # LSTM: same cell-state selection rule as the PyTorch module.
        c_enc = h_enc if len(encoder_final) == 1 else encoder_final[1]
        h_flat, c_flat = _dense_bridge((h_enc, c_enc),
                                       (self.w_h, self.w_c),
                                       (self.b_h, self.b_c))
        return (self._unflatten(h_flat), self._unflatten(c_flat))


# ---------------------------------------------------------------------------
# Main: small deterministic example + pure-JAX reference check.
# ---------------------------------------------------------------------------
if __name__ == "__main__":
    enc_layers, enc_rnn_size = 2, 16
    dec_layers, dec_rnn_size = 2, 16
    batch = 4

    key = jax.random.PRNGKey(0)
    k_h, k_c, k_p1, k_p2 = jax.random.split(key, 4)

    h_enc = jax.random.normal(k_h, (enc_layers, batch, enc_rnn_size),
                              dtype=jnp.float32)
    c_enc = jax.random.normal(k_c, (enc_layers, batch, enc_rnn_size),
                              dtype=jnp.float32)

    def ref_linear(state, w_pt, b_pt):
        L, B, E = state.shape
        x = jnp.transpose(state, (1, 0, 2)).reshape(B, L * E)
        y = x @ w_pt.T + b_pt
        return jnp.transpose(y.reshape(B, dec_layers, dec_rnn_size), (1, 0, 2))

    # ---- LSTM branch: fused h/c kernel, f32 weights -> tight check ----
    lstm = DenseBridge(enc_layers, enc_rnn_size, False, 'LSTM',
                       dec_layers, dec_rnn_size, key=k_p1,
                       param_dtype=jnp.float32)
    h_dec, c_dec = jax.block_until_ready(lstm((h_enc, c_enc)))

    h_ref = ref_linear(h_enc, lstm.w_h_pt, lstm.b_h_pt)
    c_ref = ref_linear(c_enc, lstm.w_c_pt, lstm.b_c_pt)
    assert h_dec.shape == (dec_layers, batch, dec_rnn_size)
    assert c_dec.shape == (dec_layers, batch, dec_rnn_size)
    assert jnp.allclose(h_dec, h_ref, atol=1e-5, rtol=1e-5)
    assert jnp.allclose(c_dec, c_ref, atol=1e-5, rtol=1e-5)

    # ---- GRU branch: bf16 weights + bf16 activations (scratch-acc path) ----
    gru = DenseBridge(enc_layers, enc_rnn_size, False, 'GRU',
                      dec_layers, dec_rnn_size, key=k_p2,
                      param_dtype=jnp.bfloat16)
    (h_dec_g,) = jax.block_until_ready(gru((h_enc.astype(jnp.bfloat16),)))
    h_ref_g = ref_linear(h_enc, gru.w_h_pt, gru.b_h_pt)
    assert h_dec_g.shape == (dec_layers, batch, dec_rnn_size)
    assert h_dec_g.dtype == jnp.bfloat16
    assert jnp.allclose(h_dec_g.astype(jnp.float32), h_ref_g,
                        atol=5e-2, rtol=5e-2)

    print("KERNEL_OK")
</pallas_src>

<mosaic_0001>
module attributes {stable_mosaic.version = 11 : i64} {
  func.func @kernel(%arg0: i32, %arg1: i32, %arg2: memref<1x4x16xf32, #tpu.memory_space<vmem>>, %arg3: memref<1x4x16xf32, #tpu.memory_space<vmem>>, %arg4: memref<1x16x128xf32, #tpu.memory_space<vmem>>, %arg5: memref<1x16x128xf32, #tpu.memory_space<vmem>>, %arg6: memref<1x128xf32, #tpu.memory_space<vmem>>, %arg7: memref<1x128xf32, #tpu.memory_space<vmem>>, %arg8: memref<4x128xf32, #tpu.memory_space<vmem>>, %arg9: memref<4x128xf32, #tpu.memory_space<vmem>>) attributes {dimension_semantics = [#tpu.dimension_semantics<parallel>, #tpu.dimension_semantics<arbitrary>], iteration_bounds = array<i64: 1, 2>, scalar_prefetch = 0 : i64, scratch_operands = 0 : i64, tpu.core_type = #tpu.core_type<tc>, window_params = [{transform_indices = @transform_0, window_bounds = array<i64: 1, 4, 16>}, {transform_indices = @transform_1, window_bounds = array<i64: 1, 4, 16>}, {transform_indices = @transform_2, window_bounds = array<i64: 1, 16, 128>}, {transform_indices = @transform_3, window_bounds = array<i64: 1, 16, 128>}, {transform_indices = @transform_4, window_bounds = array<i64: 1, 128>}, {transform_indices = @transform_5, window_bounds = array<i64: 1, 128>}, {transform_indices = @transform_6, window_bounds = array<i64: 4, 128>}, {transform_indices = @transform_7, window_bounds = array<i64: 4, 128>}]} {
    %c0_i32 = arith.constant 0 : i32
    %0 = arith.cmpi eq, %arg1, %c0_i32 : i32
    %1 = arith.extui %0 : i1 to i32
    %c0_i32_0 = arith.constant 0 : i32
    %2 = arith.cmpi ne, %1, %c0_i32_0 : i32
    scf.if %2 {
      %cst_22 = arith.constant 0.000000e+00 : f32
      %22 = vector.broadcast %cst_22 : f32 to vector<4x128xf32>
      %c0_23 = arith.constant 0 : index
      %c0_24 = arith.constant 0 : index
      %23 = vector.load %arg8[%c0_23, %c0_24] : memref<4x128xf32, #tpu.memory_space<vmem>>, vector<4x128xf32>
      tpu.vector_store %arg8[%c0_23, %c0_24], %22 {strides = array<i32>} : memref<4x128xf32, #tpu.memory_space<vmem>>, vector<4x128xf32>,
      %cst_25 = arith.constant 0.000000e+00 : f32
      %24 = vector.broadcast %cst_25 : f32 to vector<4x128xf32>
      %c0_26 = arith.constant 0 : index
      %c0_27 = arith.constant 0 : index
      %25 = vector.load %arg9[%c0_26, %c0_27] : memref<4x128xf32, #tpu.memory_space<vmem>>, vector<4x128xf32>
      tpu.vector_store %arg9[%c0_26, %c0_27], %24 {strides = array<i32>} : memref<4x128xf32, #tpu.memory_space<vmem>>, vector<4x128xf32>,
    } else {
    }
    %c0 = arith.constant 0 : index
    %c0_1 = arith.constant 0 : index
    %3 = vector.load %arg8[%c0, %c0_1] : memref<4x128xf32, #tpu.memory_space<vmem>>, vector<4x128xf32>
    %c0_2 = arith.constant 0 : index
    %c0_3 = arith.constant 0 : index
    %c0_4 = arith.constant 0 : index
    %4 = vector.load %arg2[%c0_2, %c0_3, %c0_4] : memref<1x4x16xf32, #tpu.memory_space<vmem>>, vector<1x4x16xf32>
    %5 = vector.shape_cast %4 : vector<1x4x16xf32> to vector<4x16xf32>
    %c0_5 = arith.constant 0 : index
    %c0_6 = arith.constant 0 : index
    %c0_7 = arith.constant 0 : index
    %6 = vector.load %arg4[%c0_5, %c0_6, %c0_7] : memref<1x16x128xf32, #tpu.memory_space<vmem>>, vector<1x16x128xf32>
    %7 = vector.shape_cast %6 : vector<1x16x128xf32> to vector<16x128xf32>
    %cst = arith.constant dense<0.000000e+00> : vector<4x128xf32>
    %8 = tpu.matmul %5, %7, %cst {dimension_numbers = #tpu.dot_dimension_numbers<[1], [0], [0], [1], [0, 0, 1, 1], [], []>} : vector<4x16xf32>, vector<16x128xf32>, vector<4x128xf32> -> vector<4x128xf32>
    %9 = arith.addf %3, %8 : vector<4x128xf32>
    %c0_8 = arith.constant 0 : index
    %c0_9 = arith.constant 0 : index
    %10 = vector.load %arg8[%c0_8, %c0_9] : memref<4x128xf32, #tpu.memory_space<vmem>>, vector<4x128xf32>
    tpu.vector_store %arg8[%c0_8, %c0_9], %9 {strides = array<i32>} : memref<4x128xf32, #tpu.memory_space<vmem>>, vector<4x128xf32>,
    %c0_10 = arith.constant 0 : index
    %c0_11 = arith.constant 0 : index
    %11 = vector.load %arg9[%c0_10, %c0_11] : memref<4x128xf32, #tpu.memory_space<vmem>>, vector<4x128xf32>
    %c0_12 = arith.constant 0 : index
    %c0_13 = arith.constant 0 : index
    %c0_14 = arith.constant 0 : index
    %12 = vector.load %arg3[%c0_12, %c0_13, %c0_14] : memref<1x4x16xf32, #tpu.memory_space<vmem>>, vector<1x4x16xf32>
    %13 = vector.shape_cast %12 : vector<1x4x16xf32> to vector<4x16xf32>
    %c0_15 = arith.constant 0 : index
    %c0_16 = arith.constant 0 : index
    %c0_17 = arith.constant 0 : index
    %14 = vector.load %arg5[%c0_15, %c0_16, %c0_17] : memref<1x16x128xf32, #tpu.memory_space<vmem>>, vector<1x16x128xf32>
    %15 = vector.shape_cast %14 : vector<1x16x128xf32> to vector<16x128xf32>
    %cst_18 = arith.constant dense<0.000000e+00> : vector<4x128xf32>
    %16 = tpu.matmul %13, %15, %cst_18 {dimension_numbers = #tpu.dot_dimension_numbers<[1], [0], [0], [1], [0, 0, 1, 1], [], []>} : vector<4x16xf32>, vector<16x128xf32>, vector<4x128xf32> -> vector<4x128xf32>
    %17 = arith.addf %11, %16 : vector<4x128xf32>
    %c0_19 = arith.constant 0 : index
    %c0_20 = arith.constant 0 : index
    %18 = vector.load %arg9[%c0_19, %c0_20] : memref<4x128xf32, #tpu.memory_space<vmem>>, vector<4x128xf32>
    tpu.vector_store %arg9[%c0_19, %c0_20], %17 {strides = array<i32>} : memref<4x128xf32, #tpu.memory_space<vmem>>, vector<4x128xf32>,
    %c1_i32 = arith.constant 1 : i32
    %19 = arith.cmpi eq, %arg1, %c1_i32 : i32
    %20 = arith.extui %19 : i1 to i32
    %c0_i32_21 = arith.constant 0 : i32
    %21 = arith.cmpi ne, %20, %c0_i32_21 : i32
    scf.if %21 {
      %c0_22 = arith.constant 0 : index
      %c0_23 = arith.constant 0 : index
      %22 = vector.load %arg8[%c0_22, %c0_23] : memref<4x128xf32, #tpu.memory_space<vmem>>, vector<4x128xf32>
      %c0_24 = arith.constant 0 : index
      %c0_25 = arith.constant 0 : index
      %23 = vector.load %arg6[%c0_24, %c0_25] : memref<1x128xf32, #tpu.memory_space<vmem>>, vector<1x128xf32>
      %24 = vector.broadcast %23 : vector<1x128xf32> to vector<4x128xf32>
      %25 = arith.addf %22, %24 : vector<4x128xf32>
      %c0_26 = arith.constant 0 : index
      %c0_27 = arith.constant 0 : index
      %26 = vector.load %arg8[%c0_26, %c0_27] : memref<4x128xf32, #tpu.memory_space<vmem>>, vector<4x128xf32>
      tpu.vector_store %arg8[%c0_26, %c0_27], %25 {strides = array<i32>} : memref<4x128xf32, #tpu.memory_space<vmem>>, vector<4x128xf32>,
      %c0_28 = arith.constant 0 : index
      %c0_29 = arith.constant 0 : index
      %27 = vector.load %arg9[%c0_28, %c0_29] : memref<4x128xf32, #tpu.memory_space<vmem>>, vector<4x128xf32>
      %c0_30 = arith.constant 0 : index
      %c0_31 = arith.constant 0 : index
      %28 = vector.load %arg7[%c0_30, %c0_31] : memref<1x128xf32, #tpu.memory_space<vmem>>, vector<1x128xf32>
      %29 = vector.broadcast %28 : vector<1x128xf32> to vector<4x128xf32>
      %30 = arith.addf %27, %29 : vector<4x128xf32>
      %c0_32 = arith.constant 0 : index
      %c0_33 = arith.constant 0 : index
      %31 = vector.load %arg9[%c0_32, %c0_33] : memref<4x128xf32, #tpu.memory_space<vmem>>, vector<4x128xf32>
      tpu.vector_store %arg9[%c0_32, %c0_33], %30 {strides = array<i32>} : memref<4x128xf32, #tpu.memory_space<vmem>>, vector<4x128xf32>,
    } else {
    }
    return
  }
  func.func @transform_0(%arg0: i32, %arg1: i32) -> (i32, i32, i32) {
    %c0_i32 = arith.constant 0 : i32
    %c0_i32_0 = arith.constant 0 : i32
    %c0_i32_1 = arith.constant 0 : i32
    return %arg1, %c0_i32, %c0_i32_0 : i32, i32, i32
  }
  func.func @transform_1(%arg0: i32, %arg1: i32) -> (i32, i32, i32) {
    %c0_i32 = arith.constant 0 : i32
    %c0_i32_0 = arith.constant 0 : i32
    %c0_i32_1 = arith.constant 0 : i32
    return %arg1, %c0_i32, %c0_i32_0 : i32, i32, i32
  }
  func.func @transform_2(%arg0: i32, %arg1: i32) -> (i32, i32, i32) {
    %c0_i32 = arith.constant 0 : i32
    %c0_i32_0 = arith.constant 0 : i32
    return %arg1, %c0_i32, %arg0 : i32, i32, i32
  }
  func.func @transform_3(%arg0: i32, %arg1: i32) -> (i32, i32, i32) {
    %c0_i32 = arith.constant 0 : i32
    %c0_i32_0 = arith.constant 0 : i32
    return %arg1, %c0_i32, %arg0 : i32, i32, i32
  }
  func.func @transform_4(%arg0: i32, %arg1: i32) -> (i32, i32) {
    %c0_i32 = arith.constant 0 : i32
    %c0_i32_0 = arith.constant 0 : i32
    return %c0_i32, %arg0 : i32, i32
  }
  func.func @transform_5(%arg0: i32, %arg1: i32) -> (i32, i32) {
    %c0_i32 = arith.constant 0 : i32
    %c0_i32_0 = arith.constant 0 : i32
    return %c0_i32, %arg0 : i32, i32
  }
  func.func @transform_6(%arg0: i32, %arg1: i32) -> (i32, i32) {
    %c0_i32 = arith.constant 0 : i32
    %c0_i32_0 = arith.constant 0 : i32
    return %c0_i32, %arg0 : i32, i32
  }
  func.func @transform_7(%arg0: i32, %arg1: i32) -> (i32, i32) {
    %c0_i32 = arith.constant 0 : i32
    %c0_i32_0 = arith.constant 0 : i32
    return %c0_i32, %arg0 : i32, i32
  }
}

</mosaic_0001>

<llo_original>
// kernel: tpu_custom_call.1
$region0: #{tpu_custom_call.1}
  #allocation0 [shape = 'u32[]', space=smem, size = 0x4, offset = 0x4, fixed_abs, tag = 'smem constant byte address 0x4 - core index']
  #allocation1 [shape = 'u32[144,128]{1,0:T(1,128)}', space=vmem, size = 0x12000, scoped, tag = 'internal scratch']
  %s0 = inlined_call_operand.hbm [shape: f32[2,4,16], index: 0, kind: input, shape index: {}]
  %s1 = inlined_call_operand.hbm [shape: f32[2,4,16], index: 1, kind: input, shape index: {}]
  %s2 = inlined_call_operand.hbm [shape: f32[2,16,128], index: 2, kind: input, shape index: {}]
  %s3 = inlined_call_operand.hbm [shape: f32[2,16,128], index: 3, kind: input, shape index: {}]
  %s4 = inlined_call_operand.vmem [shape: f32[1,128], index: 4, kind: input, shape index: {}]
  %s5 = inlined_call_operand.vmem [shape: f32[1,128], index: 5, kind: input, shape index: {}]
  %s6 = inlined_call_operand.hbm [shape: f32[4,128], index: 6, kind: output, shape index: {0}]
  %s7 = inlined_call_operand.hbm [shape: f32[4,128], index: 7, kind: output, shape index: {1}]
  %8 = xla_tuple %s6, %s7
  %s9 = sld [smem:[#allocation0]]
  $region89: #{tpu_custom_call.1} parent=0
    _
  %s11 = ssub.s32 1, %s9
  %s12 = scalar_select 0, %s11, %s9
  $region1: #{tpu_custom_call.1} parent=0
    #allocation2 [shape = 'u8[4096]{0}', space=vmem, size = 0x1000, scoped, tag = 'input window, operand 0']
    #allocation3 [shape = 's32[2]{0}', space=sflag, size = 0x8, scoped, tag = 'scoped memory for tpu_custom_call.1']
    #allocation4 [shape = 's32[2]{0}', space=sflag, size = 0x8, scoped, tag = 'scoped memory for tpu_custom_call.1']
    #allocation5 [shape = 'u8[4096]{0}', space=vmem, size = 0x1000, scoped, tag = 'input window, operand 1']
    #allocation6 [shape = 's32[2]{0}', space=sflag, size = 0x8, scoped, tag = 'scoped memory for tpu_custom_call.1']
    #allocation7 [shape = 'u8[16384]{0}', space=vmem, size = 0x4000, scoped, tag = 'input window, operand 2']
    #allocation8 [shape = 'u8[16384]{0}', space=vmem, size = 0x4000, scoped, tag = 'input window, operand 3']
    #allocation9 [shape = 's32[2]{0}', space=sflag, size = 0x8, scoped, tag = 'scoped memory for tpu_custom_call.1']
    #allocation10 [shape = 'u8[2048]{0}', space=vmem, size = 0x800, scoped, tag = 'output window, operand 0, single buffered']
    #allocation11 [shape = 'u8[2048]{0}', space=vmem, size = 0x800, scoped, tag = 'output window, operand 1, single buffered']
    #allocation12 [shape = 's32[1]{0}', space=sflag, size = 0x4, scoped, tag = 'scoped memory for tpu_custom_call.1']
    %13 = vsyncpa [#allocation3], 0
    %s14 = scalar_lea.sflag [#allocation3], 1
    %15 = vsyncpa %s14, 0
    %16 = vsyncpa [#allocation6], 0
    %s17 = scalar_lea.sflag [#allocation6], 1
    %18 = vsyncpa %s17, 0
    %19 = vsyncpa [#allocation9], 0
    %s20 = scalar_lea.sflag [#allocation9], 1
    %21 = vsyncpa %s20, 0
    %22 = vsyncpa [#allocation4], 0
    %23 = vsyncpa [#allocation12], 0
    loop: start=0, step=1, limit=4
    $region2: #{tpu_custom_call.1} parent=1 // loop_pre_header
      _
    $region3: #{tpu_custom_call.1} parent=1 // loop_header
      %s25 = sphi 0, %s29
      %p26 = scmp.ge.s32.totalorder %s25, 4
      %s32 = sphi 0, %s44
      %s33 = sphi 0, %s40
      %s34 = sphi 0, %s32
      %s35 = sphi 0, %s33
      %s36 = sphi 0, %s34
      %s37 = sphi 0, %s35
      %s47 = sphi 0, %s49
      %s50 = sphi 0, %s47
      %s51 = sphi 0, %s50
      %s67 = sphi 0, %s51
      %s73 = sphi 0, %s75
      %s76 = sphi 0, %s73
      %s77 = sphi 0, %s76
      %s93 = sphi 0, %s77
      %s101 = sphi 0, %s103
      %s104 = sphi 0, %s101
      %s105 = sphi 0, %s104
      %s121 = sphi 0, %s105
      %s129 = sphi 0, %s131
      %s132 = sphi 0, %s129
      %s133 = sphi 0, %s132
      %s149 = sphi 0, %s133
      %s155 = sphi 0, %s157
      %s158 = sphi 0, %s155
      %s159 = sphi 0, %s158
      %s175 = sphi 0, %s159
      %s181 = sphi 0, %s183
      %s184 = sphi 0, %s181
      %s185 = sphi 0, %s184
      %s201 = sphi 0, %s185
      %s207 = sphi 0, %s209
      %s210 = sphi 0, %s207
      %s211 = sphi 0, %s210
      %s227 = sphi 0, %s211
      %s233 = sphi 0, %s235
      %s236 = sphi 0, %s233
      %s237 = sphi 0, %s236
      %s253 = sphi 0, %s237
    $region4: #{tpu_custom_call.1} parent=1 // loop_header_branch
      %28 = sbr.rel (%p26) target = $region8
    $region5: #{tpu_custom_call.1} parent=1 // loop_body
      %s30 = ssub.s32 %s25, 1
      %s31 = ssub.s32 %s25, 2
      %s38 = sadd.s32 1, %s33
      %p39 = scmp.ge.s32.totalorder %s38, 2
      %s40 = scalar_select %p39, 0, %s38
      %s41 = sadd.s32 1, %s32
      %s42 = scalar_select %p39, %s41, %s32
      %p43 = scmp.ge.s32.totalorder %s42, 1
      %s44 = scalar_select %p43, 0, %s42
      %s45 = ssub.s32 %s33, %s40
      %p46 = scmp.eq.s32.totalorder %s45, 0
      %s48 = sadd.s32 %s47, 1
      %s49 = scalar_select %p46, %s47, %s48
      %p52 = pneg %p46
      %p53 = scmp.eq.s32.totalorder %s25, 1
      %p54 = por %p52, %p53
      %p55 = scmp.ne.s32.totalorder %s47, %s50
      %p56 = scmp.eq.s32.totalorder %s25, 0
      %p57 = por %p55, %p56
      %p58 = scmp.ne.s32.totalorder %s47, %s50
      %p59 = scmp.eq.s32.totalorder %s30, 1
      %p60 = por %p58, %p59
      %p61 = scmp.ne.s32.totalorder %s50, %s51
      %p62 = scmp.eq.s32.totalorder %s30, 0
      %p63 = por %p61, %p62
      %p64 = scmp.ne.s32.totalorder %s50, %s51
      %p65 = scmp.eq.s32.totalorder %s31, 1
      %p66 = por %p64, %p65
      %p68 = scmp.ne.s32.totalorder %s51, %s67
      %p69 = scmp.eq.s32.totalorder %s31, 0
      %p70 = por %p68, %p69
      %s71 = ssub.s32 %s33, %s40
      %p72 = scmp.eq.s32.totalorder %s71, 0
      %s74 = sadd.s32 %s73, 1
      %s75 = scalar_select %p72, %s73, %s74
      %p78 = pneg %p72
      %p79 = scmp.eq.s32.totalorder %s25, 1
      %p80 = por %p78, %p79
      %p81 = scmp.ne.s32.totalorder %s73, %s76
      %p82 = scmp.eq.s32.totalorder %s25, 0
      %p83 = por %p81, %p82
      %p84 = scmp.ne.s32.totalorder %s73, %s76
      %p85 = scmp.eq.s32.totalorder %s30, 1
      %p86 = por %p84, %p85
      %p87 = scmp.ne.s32.totalorder %s76, %s77
      %p88 = scmp.eq.s32.totalorder %s30, 0
      %p89 = por %p87, %p88
      %p90 = scmp.ne.s32.totalorder %s76, %s77
      %p91 = scmp.eq.s32.totalorder %s31, 1
      %p92 = por %p90, %p91
      %p94 = scmp.ne.s32.totalorder %s77, %s93
      %p95 = scmp.eq.s32.totalorder %s31, 0
      %p96 = por %p94, %p95
      %s97 = ssub.s32 %s33, %s40
      %s98 = ssub.s32 %s32, %s44
      %s99 = sor.u32 %s97, %s98
      %p100 = scmp.eq.s32.totalorder %s99, 0
      %s102 = sadd.s32 %s101, 1
      %s103 = scalar_select %p100, %s101, %s102
      %p106 = pneg %p100
      %p107 = scmp.eq.s32.totalorder %s25, 1
      %p108 = por %p106, %p107
      %p109 = scmp.ne.s32.totalorder %s101, %s104
      %p110 = scmp.eq.s32.totalorder %s25, 0
      %p111 = por %p109, %p110
      %p112 = scmp.ne.s32.totalorder %s101, %s104
      %p113 = scmp.eq.s32.totalorder %s30, 1
      %p114 = por %p112, %p113
      %p115 = scmp.ne.s32.totalorder %s104, %s105
      %p116 = scmp.eq.s32.totalorder %s30, 0
      %p117 = por %p115, %p116
      %p118 = scmp.ne.s32.totalorder %s104, %s105
      %p119 = scmp.eq.s32.totalorder %s31, 1
      %p120 = por %p118, %p119
      %p122 = scmp.ne.s32.totalorder %s105, %s121
      %p123 = scmp.eq.s32.totalorder %s31, 0
      %p124 = por %p122, %p123
      %s125 = ssub.s32 %s33, %s40
      %s126 = ssub.s32 %s32, %s44
      %s127 = sor.u32 %s125, %s126
      %p128 = scmp.eq.s32.totalorder %s127, 0
      %s130 = sadd.s32 %s129, 1
      %s131 = scalar_select %p128, %s129, %s130
      %p134 = pneg %p128
      %p135 = scmp.eq.s32.totalorder %s25, 1
      %p136 = por %p134, %p135
      %p137 = scmp.ne.s32.totalorder %s129, %s132
      %p138 = scmp.eq.s32.totalorder %s25, 0
      %p139 = por %p137, %p138
      %p140 = scmp.ne.s32.totalorder %s129, %s132
      %p141 = scmp.eq.s32.totalorder %s30, 1
      %p142 = por %p140, %p141
      %p143 = scmp.ne.s32.totalorder %s132, %s133
      %p144 = scmp.eq.s32.totalorder %s30, 0
      %p145 = por %p143, %p144
      %p146 = scmp.ne.s32.totalorder %s132, %s133
      %p147 = scmp.eq.s32.totalorder %s31, 1
      %p148 = por %p146, %p147
      %p150 = scmp.ne.s32.totalorder %s133, %s149
      %p151 = scmp.eq.s32.totalorder %s31, 0
      %p152 = por %p150, %p151
      %s153 = ssub.s32 %s32, %s44
      %p154 = scmp.eq.s32.totalorder %s153, 0
      %s156 = sadd.s32 %s155, 1
      %s157 = scalar_select %p154, %s155, %s156
      %p160 = pneg %p154
      %p161 = scmp.eq.s32.totalorder %s25, 1
      %p162 = por %p160, %p161
      %p163 = scmp.ne.s32.totalorder %s155, %s158
      %p164 = scmp.eq.s32.totalorder %s25, 0
      %p165 = por %p163, %p164
      %p166 = scmp.ne.s32.totalorder %s155, %s158
      %p167 = scmp.eq.s32.totalorder %s30, 1
      %p168 = por %p166, %p167
      %p169 = scmp.ne.s32.totalorder %s158, %s159
      %p170 = scmp.eq.s32.totalorder %s30, 0
      %p171 = por %p169, %p170
      %p172 = scmp.ne.s32.totalorder %s158, %s159
      %p173 = scmp.eq.s32.totalorder %s31, 1
      %p174 = por %p172, %p173
      %p176 = scmp.ne.s32.totalorder %s159, %s175
      %p177 = scmp.eq.s32.totalorder %s31, 0
      %p178 = por %p176, %p177
      %s179 = ssub.s32 %s32, %s44
      %p180 = scmp.eq.s32.totalorder %s179, 0
      %s182 = sadd.s32 %s181, 1
      %s183 = scalar_select %p180, %s181, %s182
      %p186 = pneg %p180
      %p187 = scmp.eq.s32.totalorder %s25, 1
      %p188 = por %p186, %p187
      %p189 = scmp.ne.s32.totalorder %s181, %s184
      %p190 = scmp.eq.s32.totalorder %s25, 0
      %p191 = por %p189, %p190
      %p192 = scmp.ne.s32.totalorder %s181, %s184
      %p193 = scmp.eq.s32.totalorder %s30, 1
      %p194 = por %p192, %p193
      %p195 = scmp.ne.s32.totalorder %s184, %s185
      %p196 = scmp.eq.s32.totalorder %s30, 0
      %p197 = por %p195, %p196
      %p198 = scmp.ne.s32.totalorder %s184, %s185
      %p199 = scmp.eq.s32.totalorder %s31, 1
      %p200 = por %p198, %p199
      %p202 = scmp.ne.s32.totalorder %s185, %s201
      %p203 = scmp.eq.s32.totalorder %s31, 0
      %p204 = por %p202, %p203
      %s205 = ssub.s32 %s32, %s44
      %p206 = scmp.eq.s32.totalorder %s205, 0
      %s208 = sadd.s32 %s207, 1
      %s209 = scalar_select %p206, %s207, %s208
      %p212 = pneg %p206
      %p213 = scmp.eq.s32.totalorder %s25, 1
      %p214 = por %p212, %p213
      %p215 = scmp.ne.s32.totalorder %s207, %s210
      %p216 = scmp.eq.s32.totalorder %s25, 0
      %p217 = por %p215, %p216
      %p218 = scmp.ne.s32.totalorder %s207, %s210
      %p219 = scmp.eq.s32.totalorder %s30, 1
      %p220 = por %p218, %p219
      %p221 = scmp.ne.s32.totalorder %s210, %s211
      %p222 = scmp.eq.s32.totalorder %s30, 0
      %p223 = por %p221, %p222
      %p224 = scmp.ne.s32.totalorder %s210, %s211
      %p225 = scmp.eq.s32.totalorder %s31, 1
      %p226 = por %p224, %p225
      %p228 = scmp.ne.s32.totalorder %s211, %s227
      %p229 = scmp.eq.s32.totalorder %s31, 0
      %p230 = por %p228, %p229
      %s231 = ssub.s32 %s32, %s44
      %p232 = scmp.eq.s32.totalorder %s231, 0
      %s234 = sadd.s32 %s233, 1
      %s235 = scalar_select %p232, %s233, %s234
      %p238 = pneg %p232
      %p239 = scmp.eq.s32.totalorder %s25, 1
      %p240 = por %p238, %p239
      %p241 = scmp.ne.s32.totalorder %s233, %s236
      %p242 = scmp.eq.s32.totalorder %s25, 0
      %p243 = por %p241, %p242
      %p244 = scmp.ne.s32.totalorder %s233, %s236
      %p245 = scmp.eq.s32.totalorder %s30, 1
      %p246 = por %p244, %p245
      %p247 = scmp.ne.s32.totalorder %s236, %s237
      %p248 = scmp.eq.s32.totalorder %s30, 0
      %p249 = por %p247, %p248
      %p250 = scmp.ne.s32.totalorder %s236, %s237
      %p251 = scmp.eq.s32.totalorder %s31, 1
      %p252 = por %p250, %p251
      %p254 = scmp.ne.s32.totalorder %s237, %s253
      %p255 = scmp.eq.s32.totalorder %s31, 0
      %p256 = por %p254, %p255
      %p257 = scmp.le.s32.totalorder 1, %s25
      %p258 = scmp.lt.s32.totalorder %s25, 3
      %p259 = pnand %p257, %p258
      %p260 = pneg %p259
      // Predicated region
      $region9: #{tpu_custom_call.1} parent=5 // pred_check
        _
      $region10: #{tpu_custom_call.1} parent=5 // pred_check_branch
        %262 = sbr.rel (%p259) target = $region12
      $region11: #{tpu_custom_call.1} parent=5 // pred_region
        %s263 = ssub.s32 %s25, 1
        // Predicated region
        $region13: #{tpu_custom_call.1} parent=11 // pred_check
          %p264 = pneg %p171
        $region14: #{tpu_custom_call.1} parent=11 // pred_check_branch
          %266 = sbr.rel (%p264) target = $region16
        $region15: #{tpu_custom_call.1} parent=11 // pred_region
          %p267 = scmp.lt.s32.totalorder %s34, 0
          %s268 = scalar_select %p267, %s34, 0
          %s269 = scalar_lea.vmem %s4, %s268
        $region16: #{tpu_custom_call.1} parent=11 // pred_fallthru
          _
        // Predicated region
        $region17: #{tpu_custom_call.1} parent=11 // pred_check
          %p270 = pneg %p197
        $region18: #{tpu_custom_call.1} parent=11 // pred_check_branch
          %272 = sbr.rel (%p270) target = $region20
        $region19: #{tpu_custom_call.1} parent=11 // pred_region
          %p273 = scmp.lt.s32.totalorder %s34, 0
          %s274 = scalar_select %p273, %s34, 0
          %s275 = scalar_lea.vmem %s5, %s274
        $region20: #{tpu_custom_call.1} parent=11 // pred_fallthru
          _
      $region12: #{tpu_custom_call.1} parent=5 // pred_fallthru
        _
      %p276 = scmp.lt.s32.totalorder %s25, 2
      // Predicated region
      $region21: #{tpu_custom_call.1} parent=5 // pred_check
        %p277 = pneg %p276
      $region22: #{tpu_custom_call.1} parent=5 // pred_check_branch
        %279 = sbr.rel (%p277) target = $region24
      $region23: #{tpu_custom_call.1} parent=5 // pred_region
        // Predicated region
        $region25: #{tpu_custom_call.1} parent=23 // pred_check
          %p280 = pneg %p57
        $region26: #{tpu_custom_call.1} parent=23 // pred_check_branch
          %282 = sbr.rel (%p280) target = $region28
        $region27: #{tpu_custom_call.1} parent=23 // pred_region
          %s283 = sand.u32 %s47, 1
          %s284 = scalar_lea.sflag [#allocation3], %s283
          %s285 = sand.u32 %s47, 1
          %s286 = smul.addr %s285, 4
          %s287 = scalar_lea.vmem [#allocation2], %s286
          %s289 = ssub.s32 64, 64
          %290 = vsyncadd %s284, %s289
          %s291 = smul.addr %s33, 64
          %s292 = scalar_lea.hbm %s0, %s291
          %s294 = sshll.u32 %s287, 4
          %s295 = int_to_ptr.vmem [resolvable:$true] %s294
          %297 = dma.hbm_to_vmem [thread:$0]  %s292, 64, %s295, %s284
        $region28: #{tpu_custom_call.1} parent=23 // pred_fallthru
          _
        // Predicated region
        $region29: #{tpu_custom_call.1} parent=23 // pred_check
          %p298 = pneg %p83
        $region30: #{tpu_custom_call.1} parent=23 // pred_check_branch
          %300 = sbr.rel (%p298) target = $region32
        $region31: #{tpu_custom_call.1} parent=23 // pred_region
          %s301 = sand.u32 %s25, 1
          %s302 = scalar_lea.sflag [#allocation6], %s301
          %s303 = sand.u32 %s73, 1
          %s304 = smul.addr %s303, 4
          %s305 = scalar_lea.vmem [#allocation5], %s304
          %s307 = ssub.s32 64, 64
          %308 = vsyncadd %s302, %s307
          %s309 = smul.addr %s33, 64
          %s310 = scalar_lea.hbm %s1, %s309
          %s312 = sshll.u32 %s305, 4
          %s313 = int_to_ptr.vmem [resolvable:$true] %s312
          %315 = dma.hbm_to_vmem [thread:$0]  %s310, 64, %s313, %s302
        $region32: #{tpu_custom_call.1} parent=23 // pred_fallthru
          _
        // Predicated region
        $region33: #{tpu_custom_call.1} parent=23 // pred_check
          %p316 = pneg %p111
        $region34: #{tpu_custom_call.1} parent=23 // pred_check_branch
          %318 = sbr.rel (%p316) target = $region36
        $region35: #{tpu_custom_call.1} parent=23 // pred_region
          %s319 = sand.u32 %s25, 1
          %s320 = scalar_lea.sflag [#allocation6], %s319
          %s321 = sand.u32 %s101, 1
          %s322 = smul.addr %s321, 16
          %s323 = scalar_lea.vmem [#allocation7], %s322
          %s325 = ssub.s32 256, 256
          %326 = vsyncadd %s320, %s325
          %s327 = smul.addr %s33, 2
          %s328 = sadd.s32 %s32, %s327
          %s329 = smul.addr %s328, 128
          %s330 = scalar_lea.hbm %s2, %s329
          %s331 = sshll.u32 %s323, 4
          %s332 = int_to_ptr.vmem [resolvable:$true] %s331
          %337 = dma.hbm_to_vmem [thread:$0]  %s330, 256, %s332, %s320, 128, 128, 8
        $region36: #{tpu_custom_call.1} parent=23 // pred_fallthru
          _
        // Predicated region
        $region37: #{tpu_custom_call.1} parent=23 // pred_check
          %p338 = pneg %p139
        $region38: #{tpu_custom_call.1} parent=23 // pred_check_branch
          %340 = sbr.rel (%p338) target = $region40
        $region39: #{tpu_custom_call.1} parent=23 // pred_region
          %s341 = sand.u32 %s129, 1
          %s342 = scalar_lea.sflag [#allocation9], %s341
          %s343 = sand.u32 %s129, 1
          %s344 = smul.addr %s343, 16
          %s345 = scalar_lea.vmem [#allocation8], %s344
          %s347 = ssub.s32 256, 256
          %348 = vsyncadd %s342, %s347
          %s349 = smul.addr %s33, 2
          %s350 = sadd.s32 %s32, %s349
          %s351 = smul.addr %s350, 128
          %s352 = scalar_lea.hbm %s3, %s351
          %s353 = sshll.u32 %s345, 4
          %s354 = int_to_ptr.vmem [resolvable:$true] %s353
          %359 = dma.hbm_to_vmem [thread:$0]  %s352, 256, %s354, %s342, 128, 128, 8
        $region40: #{tpu_custom_call.1} parent=23 // pred_fallthru
          _
      $region24: #{tpu_custom_call.1} parent=5 // pred_fallthru
        _
      %p360 = scmp.le.s32.totalorder 1, %s25
      %p361 = scmp.lt.s32.totalorder %s25, 3
      %p362 = pnand %p360, %p361
      %p363 = pneg %p362
      // Predicated region
      $region41: #{tpu_custom_call.1} parent=5 // pred_check
        _
      $region42: #{tpu_custom_call.1} parent=5 // pred_check_branch
        %365 = sbr.rel (%p362) target = $region44
      $region43: #{tpu_custom_call.1} parent=5 // pred_region
        %s366 = ssub.s32 %s25, 1
        %s367 = sand.u32 %s50, 1
        %s368 = scalar_lea.sflag [#allocation3], %s367
        %s369 = sand.u32 %s50, 1
        %s370 = smul.addr %s369, 4
        %s371 = scalar_lea.vmem [#allocation2], %s370
        // Predicated region
        $region45: #{tpu_custom_call.1} parent=43 // pred_check
          %p372 = pneg %p63
        $region46: #{tpu_custom_call.1} parent=43 // pred_check_branch
          %374 = sbr.rel (%p372) target = $region48
        $region47: #{tpu_custom_call.1} parent=43 // pred_region
          %375 = dma.done %s368, 64
        $region48: #{tpu_custom_call.1} parent=43 // pred_fallthru
          _
        %s376 = sand.u32 %s30, 1
        %s377 = scalar_lea.sflag [#allocation6], %s376
        %s378 = sand.u32 %s76, 1
        %s379 = smul.addr %s378, 4
        %s380 = scalar_lea.vmem [#allocation5], %s379
        // Predicated region
        $region49: #{tpu_custom_call.1} parent=43 // pred_check
          %p381 = pneg %p89
        $region50: #{tpu_custom_call.1} parent=43 // pred_check_branch
          %383 = sbr.rel (%p381) target = $region52
        $region51: #{tpu_custom_call.1} parent=43 // pred_region
          %384 = dma.done %s377, 64
        $region52: #{tpu_custom_call.1} parent=43 // pred_fallthru
          _
        %s385 = sand.u32 %s30, 1
        %s386 = scalar_lea.sflag [#allocation6], %s385
        %s387 = sand.u32 %s104, 1
        %s388 = smul.addr %s387, 16
        %s389 = scalar_lea.vmem [#allocation7], %s388
        // Predicated region
        $region53: #{tpu_custom_call.1} parent=43 // pred_check
          %p390 = pneg %p117
        $region54: #{tpu_custom_call.1} parent=43 // pred_check_branch
          %392 = sbr.rel (%p390) target = $region56
        $region55: #{tpu_custom_call.1} parent=43 // pred_region
          %393 = dma.done %s386, 256
        $region56: #{tpu_custom_call.1} parent=43 // pred_fallthru
          _
        %s394 = sand.u32 %s132, 1
        %s395 = scalar_lea.sflag [#allocation9], %s394
        %s396 = sand.u32 %s132, 1
        %s397 = smul.addr %s396, 16
        %s398 = scalar_lea.vmem [#allocation8], %s397
        // Predicated region
        $region57: #{tpu_custom_call.1} parent=43 // pred_check
          %p399 = pneg %p145
        $region58: #{tpu_custom_call.1} parent=43 // pred_check_branch
          %401 = sbr.rel (%p399) target = $region60
        $region59: #{tpu_custom_call.1} parent=43 // pred_region
          %402 = dma.done %s395, 256
        $region60: #{tpu_custom_call.1} parent=43 // pred_fallthru
          _
        %s403 = sand.u32 %s50, 1
        %s404 = scalar_lea.sflag [#allocation3], %s403
        %s405 = sand.u32 %s50, 1
        %s406 = smul.addr %s405, 4
        %s407 = scalar_lea.vmem [#allocation2], %s406
        %p408 = pneg %p63
        %p409 = pneg %p60
        %s410 = sand.u32 %s30, 1
        %s411 = scalar_lea.sflag [#allocation6], %s410
        %s412 = sand.u32 %s76, 1
        %s413 = smul.addr %s412, 4
        %s414 = scalar_lea.vmem [#allocation5], %s413
        %p415 = pneg %p89
        %p416 = pneg %p86
        %s417 = sand.u32 %s30, 1
        %s418 = scalar_lea.sflag [#allocation6], %s417
        %s419 = sand.u32 %s104, 1
        %s420 = smul.addr %s419, 16
        %s421 = scalar_lea.vmem [#allocation7], %s420
        %p422 = pneg %p117
        %p423 = pneg %p114
        %s424 = sand.u32 %s132, 1
        %s425 = scalar_lea.sflag [#allocation9], %s424
        %s426 = sand.u32 %s132, 1
        %s427 = smul.addr %s426, 16
        %s428 = scalar_lea.vmem [#allocation8], %s427
        %p429 = pneg %p145
        %p430 = pneg %p142
        %p431 = scmp.lt.s32.totalorder %s34, 0
        %s432 = scalar_select %p431, %s34, 0
        %s433 = scalar_lea.vmem %s4, %s432
        %p434 = pneg %p171
        %p435 = pneg %p168
        %p436 = scmp.lt.s32.totalorder %s34, 0
        %s437 = scalar_select %p436, %s34, 0
        %s438 = scalar_lea.vmem %s5, %s437
        %p439 = pneg %p197
        %p440 = pneg %p194
        %p441 = pneg %p223
        %p442 = pneg %p220
        %p443 = pneg %p249
        %p444 = pneg %p246
        %p445 = scmp.lt.s32.totalorder %s34, 0
        %s446 = scalar_select %p445, %s34, 0
        %s447 = scalar_lea.vmem %s4, %s446
        %p448 = scmp.lt.s32.totalorder %s34, 0
        %s449 = scalar_select %p448, %s34, 0
        %s450 = scalar_lea.vmem %s5, %s449
        %p451 = scmp.eq.s32.totalorder %s35, 0
        // Predicated region
        $region61: #{tpu_custom_call.1} parent=43 // pred_check
          %p452 = pneg %p451
        $region62: #{tpu_custom_call.1} parent=43 // pred_check_branch
          %454 = sbr.rel (%p452) target = $region64
        $region63: #{tpu_custom_call.1} parent=43 // pred_region
          %455 = vst [vmem:[#allocation10] sm:$0xf] 0.0
          %456 = vst [vmem:[#allocation11] sm:$0xf] 0.0
        $region64: #{tpu_custom_call.1} parent=43 // pred_fallthru
          _
        %v457 = vld [vmem:[#allocation10] sm:$0xf]
        %v458 = vld [vmem:[%s371] sm:$0xf]
        %v459 = vld [vmem:[%s389] sm:$0xff]
        %v460 = vld [vmem:[%s389 + $0x8] sm:$0xff]
        %vm461 = vcmask 130048
        %v463 = vsel %vm461, %v458, 0
        %465 = vmatprep.subr.mxu0 0.0
        %466 = vmatpush1.msra.mxu0 %v459
        %467 = vmatprep.subr.mxu0 0.0
        %468 = vmatpush1.msra.mxu0 %v460
        %469 = vmatprep.subr.mxu0 0.0
        %470 = vmatpush1.msra.mxu0 0.0
        %471 = vmatprep.subr.mxu0 0.0
        %472 = vmatpush1.msra.mxu0 0.0
        %473 = vmatprep.subr.mxu0 0.0
        %474 = vmatpush1.msra.mxu0 0.0
        %475 = vmatprep.subr.mxu0 0.0
        %476 = vmatpush1.msra.mxu0 0.0
        %477 = vmatprep.subr.mxu0 0.0
        %478 = vmatpush1.msra.mxu0 0.0
        %479 = vmatprep.subr.mxu0 0.0
        %480 = vmatpush1.msra.mxu0 0.0
        %481 = vmatprep.subr.mxu0 0.0
        %482 = vmatpush1.msra.mxu0 0.0
        %483 = vmatprep.subr.mxu0 0.0
        %484 = vmatpush1.msra.mxu0 0.0
        %485 = vmatprep.subr.mxu0 0.0
        %486 = vmatpush1.msra.mxu0 0.0
        %487 = vmatprep.subr.mxu0 0.0
        %488 = vmatpush1.msra.mxu0 0.0
        %489 = vmatprep.subr.mxu0 0.0
        %490 = vmatpush1.msra.mxu0 0.0
        %491 = vmatprep.subr.mxu0 0.0
        %492 = vmatpush1.msra.mxu0 0.0
        %493 = vmatprep.subr.mxu0 0.0
        %494 = vmatpush1.msra.mxu0 0.0
        %495 = vmatprep.subr.mxu0 0.0
        %496 = vmatpush1.msra.mxu0 0.0
        %497 = vmatprep.subr.mxu0 0.0
        %498 = vmatpush1.msra.mxu0 0.0
        %499 = vmatprep.subr.mxu0 0.0
        %500 = vmatpush1.msra.mxu0 0.0
        %501 = vmatprep.subr.mxu0 0.0
        %502 = vmatpush1.msra.mxu0 0.0
        %503 = vmatprep.subr.mxu0 0.0
        %504 = vmatpush1.msra.mxu0 0.0
        %505 = vmatprep.subr.mxu0 0.0
        %506 = vmatpush1.msra.mxu0 0.0
        %507 = vmatprep.subr.mxu0 0.0
        %508 = vmatpush1.msra.mxu0 0.0
        %509 = vmatprep.subr.mxu0 0.0
        %510 = vmatpush1.msra.mxu0 0.0
        %511 = vmatprep.subr.mxu0 0.0
        %512 = vmatpush1.msra.mxu0 0.0
        %513 = vmatprep.subr.mxu0 0.0
        %514 = vmatpush1.msra.mxu0 0.0
        %515 = vmatprep.subr.mxu0 0.0
        %516 = vmatpush1.msra.mxu0 0.0
        %517 = vmatprep.subr.mxu0 0.0
        %518 = vmatpush1.msra.mxu0 0.0
        %519 = vmatprep.subr.mxu0 0.0
        %520 = vmatpush1.msra.mxu0 0.0
        %521 = vmatprep.subr.mxu0 0.0
        %522 = vmatpush1.msra.mxu0 0.0
        %523 = vmatprep.subr.mxu0 0.0
        %524 = vmatpush1.msra.mxu0 0.0
        %525 = vmatprep.subr.mxu0 0.0
        %526 = vmatpush1.msra.mxu0 0.0
        %527 = vmatprep.subr.mxu0 0.0
        %528 = vmatpush1.msra.mxu0 0.0
        %529 = vmatprep.mubr.f32.mxu0 0.0
        %530 = vmatmul.mubr.f32.gmra.mrb[0].mxu0 %v463
        %v531 = vpop.f32.mrb[0].mxu0
        %v532 = vadd.f32 0.0, %v531
        %v533 = vpop.f32.mrb[0].mxu0
        %534 = vdwg.mxu0
        %v535 = vadd.f32 %v457, %v532
        %536 = vst [vmem:[#allocation10] sm:$0xf] %v535
        %v537 = vld [vmem:[#allocation11] sm:$0xf]
        %v538 = vld [vmem:[%s380] sm:$0xf]
        %v539 = vld [vmem:[%s398] sm:$0xff]
        %v540 = vld [vmem:[%s398 + $0x8] sm:$0xff]
        %v542 = vsel %vm461, %v538, 0
        %544 = vmatprep.subr.mxu0 0.0
        %545 = vmatpush1.msra.mxu0 %v539
        %546 = vmatprep.subr.mxu0 0.0
        %547 = vmatpush1.msra.mxu0 %v540
        %548 = vmatprep.subr.mxu0 0.0
        %549 = vmatpush1.msra.mxu0 0.0
        %550 = vmatprep.subr.mxu0 0.0
        %551 = vmatpush1.msra.mxu0 0.0
        %552 = vmatprep.subr.mxu0 0.0
        %553 = vmatpush1.msra.mxu0 0.0
        %554 = vmatprep.subr.mxu0 0.0
        %555 = vmatpush1.msra.mxu0 0.0
        %556 = vmatprep.subr.mxu0 0.0
        %557 = vmatpush1.msra.mxu0 0.0
        %558 = vmatprep.subr.mxu0 0.0
        %559 = vmatpush1.msra.mxu0 0.0
        %560 = vmatprep.subr.mxu0 0.0
        %561 = vmatpush1.msra.mxu0 0.0
        %562 = vmatprep.subr.mxu0 0.0
        %563 = vmatpush1.msra.mxu0 0.0
        %564 = vmatprep.subr.mxu0 0.0
        %565 = vmatpush1.msra.mxu0 0.0
        %566 = vmatprep.subr.mxu0 0.0
        %567 = vmatpush1.msra.mxu0 0.0
        %568 = vmatprep.subr.mxu0 0.0
        %569 = vmatpush1.msra.mxu0 0.0
        %570 = vmatprep.subr.mxu0 0.0
        %571 = vmatpush1.msra.mxu0 0.0
        %572 = vmatprep.subr.mxu0 0.0
        %573 = vmatpush1.msra.mxu0 0.0
        %574 = vmatprep.subr.mxu0 0.0
        %575 = vmatpush1.msra.mxu0 0.0
        %576 = vmatprep.subr.mxu0 0.0
        %577 = vmatpush1.msra.mxu0 0.0
        %578 = vmatprep.subr.mxu0 0.0
        %579 = vmatpush1.msra.mxu0 0.0
        %580 = vmatprep.subr.mxu0 0.0
        %581 = vmatpush1.msra.mxu0 0.0
        %582 = vmatprep.subr.mxu0 0.0
        %583 = vmatpush1.msra.mxu0 0.0
        %584 = vmatprep.subr.mxu0 0.0
        %585 = vmatpush1.msra.mxu0 0.0
        %586 = vmatprep.subr.mxu0 0.0
        %587 = vmatpush1.msra.mxu0 0.0
        %588 = vmatprep.subr.mxu0 0.0
        %589 = vmatpush1.msra.mxu0 0.0
        %590 = vmatprep.subr.mxu0 0.0
        %591 = vmatpush1.msra.mxu0 0.0
        %592 = vmatprep.subr.mxu0 0.0
        %593 = vmatpush1.msra.mxu0 0.0
        %594 = vmatprep.subr.mxu0 0.0
        %595 = vmatpush1.msra.mxu0 0.0
        %596 = vmatprep.subr.mxu0 0.0
        %597 = vmatpush1.msra.mxu0 0.0
        %598 = vmatprep.subr.mxu0 0.0
        %599 = vmatpush1.msra.mxu0 0.0
        %600 = vmatprep.subr.mxu0 0.0
        %601 = vmatpush1.msra.mxu0 0.0
        %602 = vmatprep.subr.mxu0 0.0
        %603 = vmatpush1.msra.mxu0 0.0
        %604 = vmatprep.subr.mxu0 0.0
        %605 = vmatpush1.msra.mxu0 0.0
        %606 = vmatprep.subr.mxu0 0.0
        %607 = vmatpush1.msra.mxu0 0.0
        %608 = vmatprep.mubr.f32.mxu0 0.0
        %609 = vmatmul.mubr.f32.gmra.mrb[0].mxu0 %v542
        %v610 = vpop.f32.mrb[0].mxu0
        %v611 = vadd.f32 0.0, %v610
        %v612 = vpop.f32.mrb[0].mxu0
        %613 = vdwg.mxu0
        %v614 = vadd.f32 %v537, %v611
        %615 = vst [vmem:[#allocation11] sm:$0xf] %v614
        %p616 = scmp.eq.s32.totalorder %s35, 1
        // Predicated region
        $region65: #{tpu_custom_call.1} parent=43 // pred_check
          %p617 = pneg %p616
        $region66: #{tpu_custom_call.1} parent=43 // pred_check_branch
          %619 = sbr.rel (%p617) target = $region68
        $region67: #{tpu_custom_call.1} parent=43 // pred_region
          %v620 = vld [vmem:[#allocation10] sm:$0xf]
          %v621 = vld [vmem:[%s447] sm:$0x1]
          %v623 = vlaneseq
          %v624 = vshrl.u32 %v623, 7
          %v625 = vsub.s32 0, %v624
          %v626 = vrot.slane %v621, %v625
          %v628 = vadd.f32 %v620, %v626
          %629 = vst [vmem:[#allocation10] sm:$0xf] %v628
          %v630 = vld [vmem:[#allocation11] sm:$0xf]
          %v631 = vld [vmem:[%s450] sm:$0x1]
          %v633 = vlaneseq
          %v634 = vshrl.u32 %v633, 7
          %v635 = vsub.s32 0, %v634
          %v636 = vrot.slane %v631, %v635
          %v638 = vadd.f32 %v630, %v636
          %639 = vst [vmem:[#allocation11] sm:$0xf] %v638
        $region68: #{tpu_custom_call.1} parent=43 // pred_fallthru
          _
        // Predicated region
        $region69: #{tpu_custom_call.1} parent=43 // pred_check
          %p640 = pneg %p220
        $region70: #{tpu_custom_call.1} parent=43 // pred_check_branch
          %642 = sbr.rel (%p640) target = $region72
        $region71: #{tpu_custom_call.1} parent=43 // pred_region
          %s644 = ssub.s32 64, 64
          %645 = vsyncadd [#allocation4], %s644
          %s646 = smul.addr %s34, 64
          %s647 = scalar_lea.hbm %s6, %s646
          %s649 = sshll.u32 [#allocation10], 4
          %s650 = int_to_ptr.vmem [resolvable:$true] %s649
          %652 = dma.vmem_to_hbm [thread:$0]  %s650, 64, %s647, [#allocation4]
        $region72: #{tpu_custom_call.1} parent=43 // pred_fallthru
          _
        // Predicated region
        $region73: #{tpu_custom_call.1} parent=43 // pred_check
          %p653 = pneg %p246
        $region74: #{tpu_custom_call.1} parent=43 // pred_check_branch
          %655 = sbr.rel (%p653) target = $region76
        $region75: #{tpu_custom_call.1} parent=43 // pred_region
          %s657 = ssub.s32 64, 64
          %658 = vsyncadd [#allocation12], %s657
          %s659 = smul.addr %s34, 64
          %s660 = scalar_lea.hbm %s7, %s659
          %s662 = sshll.u32 [#allocation11], 4
          %s663 = int_to_ptr.vmem [resolvable:$true] %s662
          %665 = dma.vmem_to_hbm [thread:$0]  %s663, 64, %s660, [#allocation12]
        $region76: #{tpu_custom_call.1} parent=43 // pred_fallthru
          _
        // Predicated region
        $region77: #{tpu_custom_call.1} parent=43 // pred_check
          %p666 = pneg %p220
        $region78: #{tpu_custom_call.1} parent=43 // pred_check_branch
          %668 = sbr.rel (%p666) target = $region80
        $region79: #{tpu_custom_call.1} parent=43 // pred_region
          %669 = dma.done [#allocation4], 64
        $region80: #{tpu_custom_call.1} parent=43 // pred_fallthru
          _
        // Predicated region
        $region81: #{tpu_custom_call.1} parent=43 // pred_check
          %p670 = pneg %p246
        $region82: #{tpu_custom_call.1} parent=43 // pred_check_branch
          %672 = sbr.rel (%p670) target = $region84
        $region83: #{tpu_custom_call.1} parent=43 // pred_region
          %673 = dma.done [#allocation12], 64
        $region84: #{tpu_custom_call.1} parent=43 // pred_fallthru
          _
      $region44: #{tpu_custom_call.1} parent=5 // pred_fallthru
        _
      %p674 = scmp.le.s32.totalorder 2, %s25
      // Predicated region
      $region85: #{tpu_custom_call.1} parent=5 // pred_check
        %p675 = pneg %p674
      $region86: #{tpu_custom_call.1} parent=5 // pred_check_branch
        %677 = sbr.rel (%p675) target = $region88
      $region87: #{tpu_custom_call.1} parent=5 // pred_region
        %s678 = ssub.s32 %s25, 2
      $region88: #{tpu_custom_call.1} parent=5 // pred_fallthru
        _
    $region6: #{tpu_custom_call.1} parent=1 // loop_footer
      %s29 = sadd.s32 1, %s25
    $region7: #{tpu_custom_call.1} parent=1 // loop_footer_branch
      %24 = sbr.rel target = $region3
    $region8: #{tpu_custom_call.1} parent=1 // loop_exit
      _
    %679 = vsyncpa [#allocation3], 1
    %s680 = scalar_lea.sflag [#allocation3], 1
    %681 = vsyncpa %s680, 1
    %682 = vsyncpa [#allocation6], 1
    %s683 = scalar_lea.sflag [#allocation6], 1
    %684 = vsyncpa %s683, 1
    %685 = vsyncpa [#allocation9], 1
    %s686 = scalar_lea.sflag [#allocation9], 1
    %687 = vsyncpa %s686, 1
    %688 = vsyncpa [#allocation4], 1
    %s689 = scalar_lea.sflag [#allocation4], 1
    %690 = vsyncpa %s689, 1
    %691 = vsyncpa [#allocation12], 1

</llo_original>
